<compile_context>
chip_gen: v7x
topology: tpu7x:2x2x1
jax: 0.10.0
libtpu: 0.0.40
codegen_flags: <defaults>
</compile_context>

<pallas_src>
import jax
import jax.numpy as jnp
from jax.experimental import pallas as pl
from jax.experimental.pallas import tpu as pltpu

NEG_SLOPE = 0.01        # torch F.leaky_relu_ default
LANE = 128              # TPU lane width
SUBLANE_BF16 = 16       # bf16 sublane packing (2 rows per 32-bit sublane slot)


def _round_up(x, m):
    return ((x + m - 1) // m) * m


def _default_vmem_limit():
    """Generation-aware VMEM budget (v5e/v6e: 128 MiB, v7x: 64 MiB per TensorCore)."""
    try:
        cap = pltpu.get_tpu_info().vmem_capacity_bytes
        return int(cap * 0.8)
    except Exception:
        return 48 * 1024 * 1024  # conservative fallback


_VMEM_LIMIT_BYTES = _default_vmem_limit()


# ----------------------------------------------------------------------------
# Fused 3-layer kernel: A is DMA'd into VMEM once, intermediates never touch HBM.
# ----------------------------------------------------------------------------
def gcn3_fused_kernel(a_ref, x_ref, w_ref, b_ref, o_ref):
    """Fused GCN3 forward.

    a_ref : [n_pad, n_pad]  bf16 adjacency (zero-padded rows/cols), resident in VMEM
    x_ref : [n_pad, D]      bf16 node features, feature dim padded to D (mult of 128)
    w_ref : [3, D, D]       bf16 stacked per-layer weights (transposed, zero-padded)
    b_ref : [3, 1, D]       f32 stacked per-layer biases (zero-padded)
    o_ref : [n_pad, D]      lane-dense output (caller slices to [:n, :s])
    """
    a = a_ref[...]                     # bf16 — reused by all three layers
    h = x_ref[...]                     # bf16 current activation
    y = None
    for layer in range(3):             # static unroll (trace-time loop)
        ax = jnp.dot(a, h, preferred_element_type=jnp.float32)           # MXU, f32 acc
        y = jnp.dot(ax.astype(jnp.bfloat16), w_ref[layer],
                    preferred_element_type=jnp.float32)                   # MXU, f32 acc
        y = y + b_ref[layer]                                              # f32 VPU epilogue
        y = jnp.where(y > 0, y, NEG_SLOPE * y)                            # leaky_relu in f32
        h = y.astype(jnp.bfloat16)                                        # feed next layer
    o_ref[...] = y.astype(o_ref.dtype)                                    # single dense store


# ----------------------------------------------------------------------------
# One-time parameter prep: transpose to [din, dout], pad every layer to a uniform
# D x D (D = max layer dim rounded to 128), cast weights to bf16, stack.
# ----------------------------------------------------------------------------
def prepare_params(params):
    dims = []
    for w, _ in params:                # torch layout: w [out, in], b [1, out]
        dout, din = w.shape
        dims += [dout, din]
    D = _round_up(max(dims), LANE)

    w_stack = jnp.zeros((len(params), D, D), jnp.bfloat16)
    b_stack = jnp.zeros((len(params), 1, D), jnp.float32)
    for l, (w, b) in enumerate(params):
        dout, din = w.shape
        w_stack = w_stack.at[l, :din, :dout].set(w.T.astype(jnp.bfloat16))
        b_stack = b_stack.at[l, 0, :dout].set(b.reshape(dout).astype(jnp.float32))
    return w_stack, b_stack, D


# ----------------------------------------------------------------------------
# One-time input prep: cast A to bf16, pad rows to multiple of 16 and features to D.
# ----------------------------------------------------------------------------
def prepare_inputs(A, X, D):
    n, d = X.shape
    n_pad = _round_up(n, SUBLANE_BF16)
    a_bf = (jnp.zeros((n_pad, n_pad), jnp.bfloat16)
            .at[:n, :n].set(A.astype(jnp.bfloat16)))
    x_pad = (jnp.zeros((n_pad, D), jnp.bfloat16)
             .at[:n, :d].set(X.astype(jnp.bfloat16)))
    return a_bf, x_pad


# ----------------------------------------------------------------------------
# Wrapper: one gridless pallas_call, 4 input DMAs + 1 output DMA, everything VMEM.
# ----------------------------------------------------------------------------
def gcn3_forward(a_bf, x_pad, w_stack, b_stack, out_dtype=jnp.float32):
    n_pad = a_bf.shape[0]
    D = w_stack.shape[-1]

    # Trace-time gate for the "A fully resident" fast path (per-generation budget).
    resident_bytes = (2 * n_pad * n_pad                 # A (bf16)
                      + 2 * 2 * n_pad * D               # X + one bf16 activation
                      + 4 * 3 * n_pad * D               # f32 temporaries (ax, y, out)
                      + 2 * w_stack.size + 4 * b_stack.size)
    if resident_bytes > 0.7 * _VMEM_LIMIT_BYTES:
        # TODO(synk): switch to the streamed-A / H-resident tiled path for large graphs.
        raise NotImplementedError(
            f"graph too large for resident-A fused kernel "
            f"({resident_bytes} B > budget {_VMEM_LIMIT_BYTES} B)")

    vmem = pl.BlockSpec(memory_space=pltpu.MemorySpace.VMEM)
    return pl.pallas_call(
        gcn3_fused_kernel,
        out_shape=jax.ShapeDtypeStruct((n_pad, D), out_dtype),
        in_specs=[vmem, vmem, vmem, vmem],
        out_specs=vmem,
        compiler_params=pltpu.CompilerParams(
            vmem_limit_bytes=_VMEM_LIMIT_BYTES),
    )(a_bf, x_pad, w_stack, b_stack)


gcn3_forward_jit = jax.jit(gcn3_forward, static_argnames=("out_dtype",))


# ----------------------------------------------------------------------------
# Initializers matching the torch module
# ----------------------------------------------------------------------------
def xavier_normal(key, out_dim, in_dim):
    std = (2.0 / (in_dim + out_dim)) ** 0.5
    return std * jax.random.normal(key, (out_dim, in_dim), dtype=jnp.float32)


def linear_bias(key, out_dim, in_dim):
    bound = 1.0 / (in_dim ** 0.5)
    return jax.random.uniform(key, (1, out_dim), dtype=jnp.float32,
                              minval=-bound, maxval=bound)


if __name__ == "__main__":
    # Small, module-consistent shapes.
    n = 8                 # number of graph nodes
    d = 32                # input feature dim
    layer1_out_dim = 64
    layer2_out_dim = 64
    s = 16                # output dim

    key = jax.random.PRNGKey(0)
    k_adj, k_x, k_w1, k_b1, k_w2, k_b2, k_w3, k_b3 = jax.random.split(key, 8)

    # Deterministic synthetic adjacency (row-normalized, self loops) + features.
    adj_raw = (jax.random.uniform(k_adj, (n, n)) > 0.6).astype(jnp.float32)
    adj_raw = adj_raw + jnp.eye(n, dtype=jnp.float32)
    A = adj_raw / jnp.sum(adj_raw, axis=1, keepdims=True)
    X = jax.random.normal(k_x, (n, d), dtype=jnp.float32)

    # Parameters in torch Linear layout (weight [out, in], bias [1, out]).
    params = [
        (xavier_normal(k_w1, layer1_out_dim, d),
         linear_bias(k_b1, layer1_out_dim, d)),
        (xavier_normal(k_w2, layer2_out_dim, layer1_out_dim),
         linear_bias(k_b2, layer2_out_dim, layer1_out_dim)),
        (xavier_normal(k_w3, s, layer2_out_dim),
         linear_bias(k_b3, s, layer2_out_dim)),
    ]

    # One-time prep (outside the per-call path).
    w_stack, b_stack, D = prepare_params(params)
    a_bf, x_pad = prepare_inputs(A, X, D)

    out_pad = gcn3_forward_jit(a_bf, x_pad, w_stack, b_stack)
    out_pad = jax.block_until_ready(out_pad)
    out = out_pad[:n, :s]          # consumer-side slice of the padded, lane-dense result
    assert out.shape == (n, s), out.shape

    # ---- Reference 1: precision-matched (bf16 MXU operands, f32 accumulate),
    #      mirrors the kernel's (A@H)@W contraction order exactly. ----
    def ref_forward_bf16(A, X, params):
        a = A.astype(jnp.bfloat16)
        h = X.astype(jnp.bfloat16)
        y = None
        for w, b in params:
            ax = jnp.dot(a, h, preferred_element_type=jnp.float32)
            y = jnp.dot(ax.astype(jnp.bfloat16), w.T.astype(jnp.bfloat16),
                        preferred_element_type=jnp.float32)
            y = y + b.reshape(1, -1)
            y = jnp.where(y > 0, y, NEG_SLOPE * y)
            h = y.astype(jnp.bfloat16)
        return y

    ref_bf16 = ref_forward_bf16(A, X, params)
    assert jnp.allclose(out, ref_bf16, atol=5e-3, rtol=5e-3), \
        float(jnp.max(jnp.abs(out - ref_bf16)))

    # ---- Reference 2: full-f32 semantics of the original torch module
    #      (loose tolerance: kernel uses bf16 MXU operands). ----
    def ref_forward_f32(A, X, params):
        h = X
        for w, b in params:
            h = A @ h
            h = h @ w.T + b
            h = jnp.where(h > 0, h, NEG_SLOPE * h)
        return h

    ref_f32 = ref_forward_f32(A, X, params)
    assert jnp.allclose(out, ref_f32, atol=0.1, rtol=0.1), \
        float(jnp.max(jnp.abs(out - ref_f32)))

    # Padded rows/columns of the kernel output must be inert (zeros past s / past n).
    assert jnp.allclose(out_pad[:n, s:], 0.0)

    print("KERNEL_OK")
</pallas_src>

<mosaic_0001>
module attributes {stable_mosaic.version = 11 : i64} {
  func.func @gcn3_fused_kernel(%arg0: memref<16x16xbf16, #tpu.memory_space<vmem>>, %arg1: memref<16x128xbf16, #tpu.memory_space<vmem>>, %arg2: memref<3x128x128xbf16, #tpu.memory_space<vmem>>, %arg3: memref<3x1x128xf32, #tpu.memory_space<vmem>>, %arg4: memref<16x128xf32, #tpu.memory_space<vmem>>) attributes {dimension_semantics = [], scalar_prefetch = 0 : i64, scratch_operands = 0 : i64, tpu.core_type = #tpu.core_type<tc>} {
    %c0 = arith.constant 0 : index
    %c0_0 = arith.constant 0 : index
    %0 = vector.load %arg0[%c0, %c0_0] : memref<16x16xbf16, #tpu.memory_space<vmem>>, vector<16x16xbf16>
    %c0_1 = arith.constant 0 : index
    %c0_2 = arith.constant 0 : index
    %1 = vector.load %arg1[%c0_1, %c0_2] : memref<16x128xbf16, #tpu.memory_space<vmem>>, vector<16x128xbf16>
    %cst = arith.constant dense<0.000000e+00> : vector<16x128xf32>
    %2 = tpu.matmul %0, %1, %cst {dimension_numbers = #tpu.dot_dimension_numbers<[1], [0], [0], [1], [0, 0, 1, 1], [], []>} : vector<16x16xbf16>, vector<16x128xbf16>, vector<16x128xf32> -> vector<16x128xf32>
    %3 = arith.truncf %2 : vector<16x128xf32> to vector<16x128xbf16>
    %c0_3 = arith.constant 0 : index
    %c0_4 = arith.constant 0 : index
    %c0_5 = arith.constant 0 : index
    %4 = vector.load %arg2[%c0_3, %c0_4, %c0_5] : memref<3x128x128xbf16, #tpu.memory_space<vmem>>, vector<1x128x128xbf16>
    %5 = vector.shape_cast %4 : vector<1x128x128xbf16> to vector<128x128xbf16>
    %cst_6 = arith.constant dense<0.000000e+00> : vector<16x128xf32>
    %6 = tpu.matmul %3, %5, %cst_6 {dimension_numbers = #tpu.dot_dimension_numbers<[1], [0], [0], [1], [0, 0, 1, 1], [], []>} : vector<16x128xbf16>, vector<128x128xbf16>, vector<16x128xf32> -> vector<16x128xf32>
    %c0_7 = arith.constant 0 : index
    %c0_8 = arith.constant 0 : index
    %c0_9 = arith.constant 0 : index
    %7 = vector.load %arg3[%c0_7, %c0_8, %c0_9] : memref<3x1x128xf32, #tpu.memory_space<vmem>>, vector<1x1x128xf32>
    %8 = vector.shape_cast %7 : vector<1x1x128xf32> to vector<1x128xf32>
    %9 = vector.broadcast %8 : vector<1x128xf32> to vector<16x128xf32>
    %10 = arith.addf %6, %9 : vector<16x128xf32>
    %cst_10 = arith.constant 0.000000e+00 : f32
    %11 = vector.broadcast %cst_10 : f32 to vector<16x128xf32>
    %12 = arith.cmpf ogt, %10, %11 : vector<16x128xf32>
    %cst_11 = arith.constant 0.00999999977 : f32
    %13 = vector.broadcast %cst_11 : f32 to vector<16x128xf32>
    %14 = arith.mulf %13, %10 : vector<16x128xf32>
    %15 = arith.select %12, %10, %14 : vector<16x128xi1>, vector<16x128xf32>
    %16 = arith.truncf %15 : vector<16x128xf32> to vector<16x128xbf16>
    %cst_12 = arith.constant dense<0.000000e+00> : vector<16x128xf32>
    %17 = tpu.matmul %0, %16, %cst_12 {dimension_numbers = #tpu.dot_dimension_numbers<[1], [0], [0], [1], [0, 0, 1, 1], [], []>} : vector<16x16xbf16>, vector<16x128xbf16>, vector<16x128xf32> -> vector<16x128xf32>
    %18 = arith.truncf %17 : vector<16x128xf32> to vector<16x128xbf16>
    %c1 = arith.constant 1 : index
    %c0_13 = arith.constant 0 : index
    %c0_14 = arith.constant 0 : index
    %19 = vector.load %arg2[%c1, %c0_13, %c0_14] : memref<3x128x128xbf16, #tpu.memory_space<vmem>>, vector<1x128x128xbf16>
    %20 = vector.shape_cast %19 : vector<1x128x128xbf16> to vector<128x128xbf16>
    %cst_15 = arith.constant dense<0.000000e+00> : vector<16x128xf32>
    %21 = tpu.matmul %18, %20, %cst_15 {dimension_numbers = #tpu.dot_dimension_numbers<[1], [0], [0], [1], [0, 0, 1, 1], [], []>} : vector<16x128xbf16>, vector<128x128xbf16>, vector<16x128xf32> -> vector<16x128xf32>
    %c1_16 = arith.constant 1 : index
    %c0_17 = arith.constant 0 : index
    %c0_18 = arith.constant 0 : index
    %22 = vector.load %arg3[%c1_16, %c0_17, %c0_18] : memref<3x1x128xf32, #tpu.memory_space<vmem>>, vector<1x1x128xf32>
    %23 = vector.shape_cast %22 : vector<1x1x128xf32> to vector<1x128xf32>
    %24 = vector.broadcast %23 : vector<1x128xf32> to vector<16x128xf32>
    %25 = arith.addf %21, %24 : vector<16x128xf32>
    %cst_19 = arith.constant 0.000000e+00 : f32
    %26 = vector.broadcast %cst_19 : f32 to vector<16x128xf32>
    %27 = arith.cmpf ogt, %25, %26 : vector<16x128xf32>
    %cst_20 = arith.constant 0.00999999977 : f32
    %28 = vector.broadcast %cst_20 : f32 to vector<16x128xf32>
    %29 = arith.mulf %28, %25 : vector<16x128xf32>
    %30 = arith.select %27, %25, %29 : vector<16x128xi1>, vector<16x128xf32>
    %31 = arith.truncf %30 : vector<16x128xf32> to vector<16x128xbf16>
    %cst_21 = arith.constant dense<0.000000e+00> : vector<16x128xf32>
    %32 = tpu.matmul %0, %31, %cst_21 {dimension_numbers = #tpu.dot_dimension_numbers<[1], [0], [0], [1], [0, 0, 1, 1], [], []>} : vector<16x16xbf16>, vector<16x128xbf16>, vector<16x128xf32> -> vector<16x128xf32>
    %33 = arith.truncf %32 : vector<16x128xf32> to vector<16x128xbf16>
    %c2 = arith.constant 2 : index
    %c0_22 = arith.constant 0 : index
    %c0_23 = arith.constant 0 : index
    %34 = vector.load %arg2[%c2, %c0_22, %c0_23] : memref<3x128x128xbf16, #tpu.memory_space<vmem>>, vector<1x128x128xbf16>
    %35 = vector.shape_cast %34 : vector<1x128x128xbf16> to vector<128x128xbf16>
    %cst_24 = arith.constant dense<0.000000e+00> : vector<16x128xf32>
    %36 = tpu.matmul %33, %35, %cst_24 {dimension_numbers = #tpu.dot_dimension_numbers<[1], [0], [0], [1], [0, 0, 1, 1], [], []>} : vector<16x128xbf16>, vector<128x128xbf16>, vector<16x128xf32> -> vector<16x128xf32>
    %c2_25 = arith.constant 2 : index
    %c0_26 = arith.constant 0 : index
    %c0_27 = arith.constant 0 : index
    %37 = vector.load %arg3[%c2_25, %c0_26, %c0_27] : memref<3x1x128xf32, #tpu.memory_space<vmem>>, vector<1x1x128xf32>
    %38 = vector.shape_cast %37 : vector<1x1x128xf32> to vector<1x128xf32>
    %39 = vector.broadcast %38 : vector<1x128xf32> to vector<16x128xf32>
    %40 = arith.addf %36, %39 : vector<16x128xf32>
    %cst_28 = arith.constant 0.000000e+00 : f32
    %41 = vector.broadcast %cst_28 : f32 to vector<16x128xf32>
    %42 = arith.cmpf ogt, %40, %41 : vector<16x128xf32>
    %cst_29 = arith.constant 0.00999999977 : f32
    %43 = vector.broadcast %cst_29 : f32 to vector<16x128xf32>
    %44 = arith.mulf %43, %40 : vector<16x128xf32>
    %45 = arith.select %42, %40, %44 : vector<16x128xi1>, vector<16x128xf32>
    %c0_30 = arith.constant 0 : index
    %c0_31 = arith.constant 0 : index
    %46 = vector.load %arg4[%c0_30, %c0_31] : memref<16x128xf32, #tpu.memory_space<vmem>>, vector<16x128xf32>
    tpu.vector_store %arg4[%c0_30, %c0_31], %45 {strides = array<i32>} : memref<16x128xf32, #tpu.memory_space<vmem>>, vector<16x128xf32>,
    return
  }
}

</mosaic_0001>

<llo_original>
// kernel: gcn3_forward.1
$region0: #{gcn3_forward.1}
  #allocation0 [shape = 'u32[]', space=smem, size = 0x4, offset = 0x4, fixed_abs, tag = 'smem constant byte address 0x4 - core index']
  #allocation1 [shape = 'u32[144,128]{1,0:T(1,128)}', space=vmem, size = 0x12000, scoped, tag = 'internal scratch']
  %s0 = inlined_call_operand.hbm [shape: bf16[16,16], index: 0, kind: input, shape index: {}]
  %s1 = inlined_call_operand.hbm [shape: bf16[16,128], index: 1, kind: input, shape index: {}]
  %s2 = inlined_call_operand.hbm [shape: bf16[3,128,128], index: 2, kind: input, shape index: {}]
  %s3 = inlined_call_operand.vmem [shape: f32[3,1,128], index: 3, kind: input, shape index: {}]
  %s4 = inlined_call_operand.hbm [shape: f32[16,128], index: 4, kind: output, shape index: {}]
  %s5 = sld [smem:[#allocation0]]
  $region38: #{gcn3_forward.1} parent=0
    _
  %s7 = ssub.s32 1, %s5
  %s8 = scalar_select 0, %s7, %s5
  $region1: #{gcn3_forward.1} parent=0
    #allocation2 [shape = 'u8[4096]{0}', space=vmem, size = 0x1000, scoped, tag = 'input window, operand 0, single buffered']
    #allocation3 [shape = 's32[1]{0}', space=sflag, size = 0x4, scoped, tag = 'scoped memory for gcn3_forward.1']
    #allocation4 [shape = 's32[1]{0}', space=sflag, size = 0x4, scoped, tag = 'scoped memory for gcn3_forward.1']
    #allocation5 [shape = 'u8[4096]{0}', space=vmem, size = 0x1000, scoped, tag = 'input window, operand 1, single buffered']
    #allocation6 [shape = 's32[1]{0}', space=sflag, size = 0x4, scoped, tag = 'scoped memory for gcn3_forward.1']
    #allocation7 [shape = 'u8[98304]{0}', space=vmem, size = 0x18000, scoped, tag = 'input window, operand 2, single buffered']
    #allocation8 [shape = 'u8[8192]{0}', space=vmem, size = 0x2000, scoped, tag = 'output window, operand 0, single buffered']
    %9 = vsyncpa [#allocation3], 0
    %10 = vsyncpa [#allocation6], 0
    %11 = vsyncpa [#allocation4], 0
    // Predicated region
    $region2: #{gcn3_forward.1} parent=1 // pred_check
      _
    $region3: #{gcn3_forward.1} parent=1 // pred_check_branch
      %13 = sbr.rel (0) target = $region5
    $region4: #{gcn3_forward.1} parent=1 // pred_region
      %s15 = ssub.s32 128, 128
      %16 = vsyncadd [#allocation3], %s15
      %s17 = sshll.u32 [#allocation2], 4
      %s18 = int_to_ptr.vmem [resolvable:$true] %s17
      %23 = dma.hbm_to_vmem [thread:$0]  %s0, 128, %s18, [#allocation3], 64, 64, 4
    $region5: #{gcn3_forward.1} parent=1 // pred_fallthru
      _
    // Predicated region
    $region6: #{gcn3_forward.1} parent=1 // pred_check
      _
    $region7: #{gcn3_forward.1} parent=1 // pred_check_branch
      %25 = sbr.rel (0) target = $region9
    $region8: #{gcn3_forward.1} parent=1 // pred_region
      %s27 = ssub.s32 128, 128
      %28 = vsyncadd [#allocation6], %s27
      %s29 = sshll.u32 [#allocation5], 4
      %s30 = int_to_ptr.vmem [resolvable:$true] %s29
      %35 = dma.hbm_to_vmem [thread:$0]  %s1, 128, %s30, [#allocation6], 64, 64, 4
    $region9: #{gcn3_forward.1} parent=1 // pred_fallthru
      _
    // Predicated region
    $region10: #{gcn3_forward.1} parent=1 // pred_check
      _
    $region11: #{gcn3_forward.1} parent=1 // pred_check_branch
      %37 = sbr.rel (0) target = $region13
    $region12: #{gcn3_forward.1} parent=1 // pred_region
      %s39 = ssub.s32 3072, 3072
      %40 = vsyncadd [#allocation6], %s39
      %s41 = sshll.u32 [#allocation7], 4
      %s42 = int_to_ptr.vmem [resolvable:$true] %s41
      %47 = dma.hbm_to_vmem [thread:$0]  %s2, 3072, %s42, [#allocation6], 64, 64, 4
    $region13: #{gcn3_forward.1} parent=1 // pred_fallthru
      _
    // Predicated region
    $region14: #{gcn3_forward.1} parent=1 // pred_check
      _
    $region15: #{gcn3_forward.1} parent=1 // pred_check_branch
      %49 = sbr.rel (0) target = $region17
    $region16: #{gcn3_forward.1} parent=1 // pred_region
      _
    $region17: #{gcn3_forward.1} parent=1 // pred_fallthru
      _
    // Predicated region
    $region18: #{gcn3_forward.1} parent=1 // pred_check
      _
    $region19: #{gcn3_forward.1} parent=1 // pred_check_branch
      %51 = sbr.rel (0) target = $region21
    $region20: #{gcn3_forward.1} parent=1 // pred_region
      %52 = dma.done [#allocation3], 128
    $region21: #{gcn3_forward.1} parent=1 // pred_fallthru
      _
    // Predicated region
    $region22: #{gcn3_forward.1} parent=1 // pred_check
      _
    $region23: #{gcn3_forward.1} parent=1 // pred_check_branch
      %54 = sbr.rel (0) target = $region25
    $region24: #{gcn3_forward.1} parent=1 // pred_region
      %55 = dma.done [#allocation6], 128
    $region25: #{gcn3_forward.1} parent=1 // pred_fallthru
      _
    // Predicated region
    $region26: #{gcn3_forward.1} parent=1 // pred_check
      _
    $region27: #{gcn3_forward.1} parent=1 // pred_check_branch
      %57 = sbr.rel (0) target = $region29
    $region28: #{gcn3_forward.1} parent=1 // pred_region
      %58 = dma.done [#allocation6], 3072
    $region29: #{gcn3_forward.1} parent=1 // pred_fallthru
      _
    %v60 = vld [vmem:[#allocation2] sm:$0xf]
    %v61 = vld [vmem:[#allocation2 + $0x4] sm:$0xf]
    %v62 = vld [vmem:[#allocation5] sm:$0xf]
    %v63 = vld [vmem:[#allocation5 + $0x4] sm:$0xf]
    %v66 = vunpack.c.l.b16 %v60
    %v67 = vunpack.c.l.b16 %v61
    %v68 = vpack.c.b16 %v67, %v66
    %v71 = vunpack.c.l.b16 %v62
    %v72 = vunpack.c.l.b16 %v63
    %v73 = vpack.c.b16 %v72, %v71
    %vm75 = vcmask 130048
    %v77 = vsel %vm75, %v68, 0
    %79 = vmatprep.subr.bf16.mxu0 0
    %80 = vmatpush1.bf16.msra.mxu0 %v73
    %81 = vmatprep.subr.bf16.mxu0 0
    %82 = vmatpush1.bf16.msra.mxu0 0
    %83 = vmatprep.subr.bf16.mxu0 0
    %84 = vmatpush1.bf16.msra.mxu0 0
    %85 = vmatprep.subr.bf16.mxu0 0
    %86 = vmatpush1.bf16.msra.mxu0 0
    %87 = vmatprep.subr.bf16.mxu0 0
    %88 = vmatpush1.bf16.msra.mxu0 0
    %89 = vmatprep.subr.bf16.mxu0 0
    %90 = vmatpush1.bf16.msra.mxu0 0
    %91 = vmatprep.subr.bf16.mxu0 0
    %92 = vmatpush1.bf16.msra.mxu0 0
    %93 = vmatprep.subr.bf16.mxu0 0
    %94 = vmatpush1.bf16.msra.mxu0 0
    %95 = vmatprep.subr.bf16.mxu0 0
    %96 = vmatpush1.bf16.msra.mxu0 0
    %97 = vmatprep.subr.bf16.mxu0 0
    %98 = vmatpush1.bf16.msra.mxu0 0
    %99 = vmatprep.subr.bf16.mxu0 0
    %100 = vmatpush1.bf16.msra.mxu0 0
    %101 = vmatprep.subr.bf16.mxu0 0
    %102 = vmatpush1.bf16.msra.mxu0 0
    %103 = vmatprep.subr.bf16.mxu0 0
    %104 = vmatpush1.bf16.msra.mxu0 0
    %105 = vmatprep.subr.bf16.mxu0 0
    %106 = vmatpush1.bf16.msra.mxu0 0
    %107 = vmatprep.subr.bf16.mxu0 0
    %108 = vmatpush1.bf16.msra.mxu0 0
    %109 = vmatprep.subr.bf16.mxu0 0
    %110 = vmatpush1.bf16.msra.mxu0 0
    %111 = vmatprep.mubr.bf16.mxu0 0
    %112 = vmatmul.mubr.bf16.gmra.mrb[0].mxu0 %v77
    %v113 = vpop.f32.mrb[0].mxu0
    %v114 = vadd.f32 0.0, %v113
    %v115 = vpop.f32.mrb[0].mxu0
    %v116 = vpop.f32.mrb[0].mxu0
    %v117 = vadd.f32 0.0, %v116
    %v118 = vpop.f32.mrb[0].mxu0
    %119 = vdwg.mxu0
    %v120 = vpack.c.bf16 %v117, %v114
    %v121 = vld [vmem:[#allocation7] sm:$0xf]
    %v122 = vld [vmem:[#allocation7 + $0x4] sm:$0xf]
    %v123 = vld [vmem:[#allocation7 + $0x8] sm:$0xf]
    %v124 = vld [vmem:[#allocation7 + $0xc] sm:$0xf]
    %v125 = vld [vmem:[#allocation7 + $0x10] sm:$0xf]
    %v126 = vld [vmem:[#allocation7 + $0x14] sm:$0xf]
    %v127 = vld [vmem:[#allocation7 + $0x18] sm:$0xf]
    %v128 = vld [vmem:[#allocation7 + $0x1c] sm:$0xf]
    %v129 = vld [vmem:[#allocation7 + $0x20] sm:$0xf]
    %v130 = vld [vmem:[#allocation7 + $0x24] sm:$0xf]
    %v131 = vld [vmem:[#allocation7 + $0x28] sm:$0xf]
    %v132 = vld [vmem:[#allocation7 + $0x2c] sm:$0xf]
    %v133 = vld [vmem:[#allocation7 + $0x30] sm:$0xf]
    %v134 = vld [vmem:[#allocation7 + $0x34] sm:$0xf]
    %v135 = vld [vmem:[#allocation7 + $0x38] sm:$0xf]
    %v136 = vld [vmem:[#allocation7 + $0x3c] sm:$0xf]
    %v137 = vld [vmem:[%s3] sm:$0x1]
    %v139 = vlaneseq
    %v140 = vshrl.u32 %v139, 7
    %v141 = vsub.s32 0, %v140
    %v142 = vrot.slane %v137, %v141
    %v160 = vunpack.c.l.b16 %v121
    %v161 = vunpack.c.l.b16 %v122
    %v162 = vunpack.c.l.b16 %v123
    %v163 = vunpack.c.l.b16 %v124
    %v164 = vunpack.c.l.b16 %v125
    %v165 = vunpack.c.l.b16 %v126
    %v166 = vunpack.c.l.b16 %v127
    %v167 = vunpack.c.l.b16 %v128
    %v168 = vunpack.c.l.b16 %v129
    %v169 = vunpack.c.l.b16 %v130
    %v170 = vunpack.c.l.b16 %v131
    %v171 = vunpack.c.l.b16 %v132
    %v172 = vunpack.c.l.b16 %v133
    %v173 = vunpack.c.l.b16 %v134
    %v174 = vunpack.c.l.b16 %v135
    %v175 = vunpack.c.l.b16 %v136
    %v176 = vpack.c.b16 %v161, %v160
    %v177 = vpack.c.b16 %v163, %v162
    %v178 = vpack.c.b16 %v165, %v164
    %v179 = vpack.c.b16 %v167, %v166
    %v180 = vpack.c.b16 %v169, %v168
    %v181 = vpack.c.b16 %v171, %v170
    %v182 = vpack.c.b16 %v173, %v172
    %v183 = vpack.c.b16 %v175, %v174
    %192 = vmatprep.subr.bf16.mxu0 0
    %193 = vmatpush1.bf16.msra.mxu0 %v176
    %194 = vmatprep.subr.bf16.mxu0 0
    %195 = vmatpush1.bf16.msra.mxu0 %v177
    %196 = vmatprep.subr.bf16.mxu0 0
    %197 = vmatpush1.bf16.msra.mxu0 %v178
    %198 = vmatprep.subr.bf16.mxu0 0
    %199 = vmatpush1.bf16.msra.mxu0 %v179
    %200 = vmatprep.subr.bf16.mxu0 0
    %201 = vmatpush1.bf16.msra.mxu0 %v180
    %202 = vmatprep.subr.bf16.mxu0 0
    %203 = vmatpush1.bf16.msra.mxu0 %v181
    %204 = vmatprep.subr.bf16.mxu0 0
    %205 = vmatpush1.bf16.msra.mxu0 %v182
    %206 = vmatprep.subr.bf16.mxu0 0
    %207 = vmatpush1.bf16.msra.mxu0 %v183
    %208 = vmatprep.subr.bf16.mxu0 0
    %209 = vmatpush1.bf16.msra.mxu0 0
    %210 = vmatprep.subr.bf16.mxu0 0
    %211 = vmatpush1.bf16.msra.mxu0 0
    %212 = vmatprep.subr.bf16.mxu0 0
    %213 = vmatpush1.bf16.msra.mxu0 0
    %214 = vmatprep.subr.bf16.mxu0 0
    %215 = vmatpush1.bf16.msra.mxu0 0
    %216 = vmatprep.subr.bf16.mxu0 0
    %217 = vmatpush1.bf16.msra.mxu0 0
    %218 = vmatprep.subr.bf16.mxu0 0
    %219 = vmatpush1.bf16.msra.mxu0 0
    %220 = vmatprep.subr.bf16.mxu0 0
    %221 = vmatpush1.bf16.msra.mxu0 0
    %222 = vmatprep.subr.bf16.mxu0 0
    %223 = vmatpush1.bf16.msra.mxu0 0
    %224 = vmatprep.mubr.bf16.mxu0 0
    %225 = vmatmul.mubr.bf16.gmra.mrb[0].mxu0 %v120
    %v226 = vpop.f32.mrb[0].mxu0
    %v227 = vadd.f32 %v142, %v226
    %v228 = vpop.f32.mrb[0].mxu0
    %v229 = vpop.f32.mrb[0].mxu0
    %v230 = vadd.f32 %v142, %v229
    %v231 = vpop.f32.mrb[0].mxu0
    %232 = vdwg.mxu0
    %vm233 = vcmp.gt.f32.partialorder %v227, 0.0
    %vm234 = vcmp.gt.f32.partialorder %v230, 0.0
    %v235 = vmul.f32 %v227, 0.01
    %v236 = vmul.f32 %v230, 0.01
    %v237 = vsel %vm233, %v227, %v235
    %v238 = vsel %vm234, %v230, %v236
    %v239 = vpack.c.bf16 %v238, %v237
    %240 = vmatprep.subr.bf16.mxu0 0
    %241 = vmatpush1.bf16.msra.mxu0 %v239
    %242 = vmatprep.subr.bf16.mxu0 0
    %243 = vmatpush1.bf16.msra.mxu0 0
    %244 = vmatprep.subr.bf16.mxu0 0
    %245 = vmatpush1.bf16.msra.mxu0 0
    %246 = vmatprep.subr.bf16.mxu0 0
    %247 = vmatpush1.bf16.msra.mxu0 0
    %248 = vmatprep.subr.bf16.mxu0 0
    %249 = vmatpush1.bf16.msra.mxu0 0
    %250 = vmatprep.subr.bf16.mxu0 0
    %251 = vmatpush1.bf16.msra.mxu0 0
    %252 = vmatprep.subr.bf16.mxu0 0
    %253 = vmatpush1.bf16.msra.mxu0 0
    %254 = vmatprep.subr.bf16.mxu0 0
    %255 = vmatpush1.bf16.msra.mxu0 0
    %256 = vmatprep.subr.bf16.mxu0 0
    %257 = vmatpush1.bf16.msra.mxu0 0
    %258 = vmatprep.subr.bf16.mxu0 0
    %259 = vmatpush1.bf16.msra.mxu0 0
    %260 = vmatprep.subr.bf16.mxu0 0
    %261 = vmatpush1.bf16.msra.mxu0 0
    %262 = vmatprep.subr.bf16.mxu0 0
    %263 = vmatpush1.bf16.msra.mxu0 0
    %264 = vmatprep.subr.bf16.mxu0 0
    %265 = vmatpush1.bf16.msra.mxu0 0
    %266 = vmatprep.subr.bf16.mxu0 0
    %267 = vmatpush1.bf16.msra.mxu0 0
    %268 = vmatprep.subr.bf16.mxu0 0
    %269 = vmatpush1.bf16.msra.mxu0 0
    %270 = vmatprep.subr.bf16.mxu0 0
    %271 = vmatpush1.bf16.msra.mxu0 0
    %272 = vmatprep.mubr.bf16.mxu0 0
    %273 = vmatmul.mubr.bf16.gmra.mrb[0].mxu0 %v77
    %v274 = vpop.f32.mrb[0].mxu0
    %v275 = vadd.f32 0.0, %v274
    %v276 = vpop.f32.mrb[0].mxu0
    %v277 = vpop.f32.mrb[0].mxu0
    %v278 = vadd.f32 0.0, %v277
    %v279 = vpop.f32.mrb[0].mxu0
    %280 = vdwg.mxu0
    %v281 = vpack.c.bf16 %v278, %v275
    %s282 = scalar_lea.vmem [#allocation7], 64
    %v283 = vld [vmem:[%s282] sm:$0xf]
    %v284 = vld [vmem:[%s282 + $0x4] sm:$0xf]
    %v285 = vld [vmem:[%s282 + $0x8] sm:$0xf]
    %v286 = vld [vmem:[%s282 + $0xc] sm:$0xf]
    %v287 = vld [vmem:[%s282 + $0x10] sm:$0xf]
    %v288 = vld [vmem:[%s282 + $0x14] sm:$0xf]
    %v289 = vld [vmem:[%s282 + $0x18] sm:$0xf]
    %v290 = vld [vmem:[%s282 + $0x1c] sm:$0xf]
    %v291 = vld [vmem:[%s282 + $0x20] sm:$0xf]
    %v292 = vld [vmem:[%s282 + $0x24] sm:$0xf]
    %v293 = vld [vmem:[%s282 + $0x28] sm:$0xf]
    %v294 = vld [vmem:[%s282 + $0x2c] sm:$0xf]
    %v295 = vld [vmem:[%s282 + $0x30] sm:$0xf]
    %v296 = vld [vmem:[%s282 + $0x34] sm:$0xf]
    %v297 = vld [vmem:[%s282 + $0x38] sm:$0xf]
    %v298 = vld [vmem:[%s282 + $0x3c] sm:$0xf]
    %s299 = scalar_lea.vmem %s3, 1
    %v300 = vld [vmem:[%s299] sm:$0x1]
    %v302 = vlaneseq
    %v303 = vshrl.u32 %v302, 7
    %v304 = vsub.s32 0, %v303
    %v305 = vrot.slane %v300, %v304
    %v323 = vunpack.c.l.b16 %v283
    %v324 = vunpack.c.l.b16 %v284
    %v325 = vunpack.c.l.b16 %v285
    %v326 = vunpack.c.l.b16 %v286
    %v327 = vunpack.c.l.b16 %v287
    %v328 = vunpack.c.l.b16 %v288
    %v329 = vunpack.c.l.b16 %v289
    %v330 = vunpack.c.l.b16 %v290
    %v331 = vunpack.c.l.b16 %v291
    %v332 = vunpack.c.l.b16 %v292
    %v333 = vunpack.c.l.b16 %v293
    %v334 = vunpack.c.l.b16 %v294
    %v335 = vunpack.c.l.b16 %v295
    %v336 = vunpack.c.l.b16 %v296
    %v337 = vunpack.c.l.b16 %v297
    %v338 = vunpack.c.l.b16 %v298
    %v339 = vpack.c.b16 %v324, %v323
    %v340 = vpack.c.b16 %v326, %v325
    %v341 = vpack.c.b16 %v328, %v327
    %v342 = vpack.c.b16 %v330, %v329
    %v343 = vpack.c.b16 %v332, %v331
    %v344 = vpack.c.b16 %v334, %v333
    %v345 = vpack.c.b16 %v336, %v335
    %v346 = vpack.c.b16 %v338, %v337
    %355 = vmatprep.subr.bf16.mxu0 0
    %356 = vmatpush1.bf16.msra.mxu0 %v339
    %357 = vmatprep.subr.bf16.mxu0 0
    %358 = vmatpush1.bf16.msra.mxu0 %v340
    %359 = vmatprep.subr.bf16.mxu0 0
    %360 = vmatpush1.bf16.msra.mxu0 %v341
    %361 = vmatprep.subr.bf16.mxu0 0
    %362 = vmatpush1.bf16.msra.mxu0 %v342
    %363 = vmatprep.subr.bf16.mxu0 0
    %364 = vmatpush1.bf16.msra.mxu0 %v343
    %365 = vmatprep.subr.bf16.mxu0 0
    %366 = vmatpush1.bf16.msra.mxu0 %v344
    %367 = vmatprep.subr.bf16.mxu0 0
    %368 = vmatpush1.bf16.msra.mxu0 %v345
    %369 = vmatprep.subr.bf16.mxu0 0
    %370 = vmatpush1.bf16.msra.mxu0 %v346
    %371 = vmatprep.subr.bf16.mxu0 0
    %372 = vmatpush1.bf16.msra.mxu0 0
    %373 = vmatprep.subr.bf16.mxu0 0
    %374 = vmatpush1.bf16.msra.mxu0 0
    %375 = vmatprep.subr.bf16.mxu0 0
    %376 = vmatpush1.bf16.msra.mxu0 0
    %377 = vmatprep.subr.bf16.mxu0 0
    %378 = vmatpush1.bf16.msra.mxu0 0
    %379 = vmatprep.subr.bf16.mxu0 0
    %380 = vmatpush1.bf16.msra.mxu0 0
    %381 = vmatprep.subr.bf16.mxu0 0
    %382 = vmatpush1.bf16.msra.mxu0 0
    %383 = vmatprep.subr.bf16.mxu0 0
    %384 = vmatpush1.bf16.msra.mxu0 0
    %385 = vmatprep.subr.bf16.mxu0 0
    %386 = vmatpush1.bf16.msra.mxu0 0
    %387 = vmatprep.mubr.bf16.mxu0 0
    %388 = vmatmul.mubr.bf16.gmra.mrb[0].mxu0 %v281
    %v389 = vpop.f32.mrb[0].mxu0
    %v390 = vadd.f32 %v305, %v389
    %v391 = vpop.f32.mrb[0].mxu0
    %v392 = vpop.f32.mrb[0].mxu0
    %v393 = vadd.f32 %v305, %v392
    %v394 = vpop.f32.mrb[0].mxu0
    %395 = vdwg.mxu0
    %vm396 = vcmp.gt.f32.partialorder %v390, 0.0
    %vm397 = vcmp.gt.f32.partialorder %v393, 0.0
    %v398 = vmul.f32 %v390, 0.01
    %v399 = vmul.f32 %v393, 0.01
    %v400 = vsel %vm396, %v390, %v398
    %v401 = vsel %vm397, %v393, %v399
    %v402 = vpack.c.bf16 %v401, %v400
    %403 = vmatprep.subr.bf16.mxu0 0
    %404 = vmatpush1.bf16.msra.mxu0 %v402
    %405 = vmatprep.subr.bf16.mxu0 0
    %406 = vmatpush1.bf16.msra.mxu0 0
    %407 = vmatprep.subr.bf16.mxu0 0
    %408 = vmatpush1.bf16.msra.mxu0 0
    %409 = vmatprep.subr.bf16.mxu0 0
    %410 = vmatpush1.bf16.msra.mxu0 0
    %411 = vmatprep.subr.bf16.mxu0 0
    %412 = vmatpush1.bf16.msra.mxu0 0
    %413 = vmatprep.subr.bf16.mxu0 0
    %414 = vmatpush1.bf16.msra.mxu0 0
    %415 = vmatprep.subr.bf16.mxu0 0
    %416 = vmatpush1.bf16.msra.mxu0 0
    %417 = vmatprep.subr.bf16.mxu0 0
    %418 = vmatpush1.bf16.msra.mxu0 0
    %419 = vmatprep.subr.bf16.mxu0 0
    %420 = vmatpush1.bf16.msra.mxu0 0
    %421 = vmatprep.subr.bf16.mxu0 0
    %422 = vmatpush1.bf16.msra.mxu0 0
    %423 = vmatprep.subr.bf16.mxu0 0
    %424 = vmatpush1.bf16.msra.mxu0 0
    %425 = vmatprep.subr.bf16.mxu0 0
    %426 = vmatpush1.bf16.msra.mxu0 0
    %427 = vmatprep.subr.bf16.mxu0 0
    %428 = vmatpush1.bf16.msra.mxu0 0
    %429 = vmatprep.subr.bf16.mxu0 0
    %430 = vmatpush1.bf16.msra.mxu0 0
    %431 = vmatprep.subr.bf16.mxu0 0
    %432 = vmatpush1.bf16.msra.mxu0 0
    %433 = vmatprep.subr.bf16.mxu0 0
    %434 = vmatpush1.bf16.msra.mxu0 0
    %435 = vmatprep.mubr.bf16.mxu0 0
    %436 = vmatmul.mubr.bf16.gmra.mrb[0].mxu0 %v77
    %v437 = vpop.f32.mrb[0].mxu0
    %v438 = vadd.f32 0.0, %v437
    %v439 = vpop.f32.mrb[0].mxu0
    %v440 = vpop.f32.mrb[0].mxu0
    %v441 = vadd.f32 0.0, %v440
    %v442 = vpop.f32.mrb[0].mxu0
    %443 = vdwg.mxu0
    %v444 = vpack.c.bf16 %v441, %v438
    %s445 = scalar_lea.vmem [#allocation7], 128
    %v446 = vld [vmem:[%s445] sm:$0xf]
    %v447 = vld [vmem:[%s445 + $0x4] sm:$0xf]
    %v448 = vld [vmem:[%s445 + $0x8] sm:$0xf]
    %v449 = vld [vmem:[%s445 + $0xc] sm:$0xf]
    %v450 = vld [vmem:[%s445 + $0x10] sm:$0xf]
    %v451 = vld [vmem:[%s445 + $0x14] sm:$0xf]
    %v452 = vld [vmem:[%s445 + $0x18] sm:$0xf]
    %v453 = vld [vmem:[%s445 + $0x1c] sm:$0xf]
    %v454 = vld [vmem:[%s445 + $0x20] sm:$0xf]
    %v455 = vld [vmem:[%s445 + $0x24] sm:$0xf]
    %v456 = vld [vmem:[%s445 + $0x28] sm:$0xf]
    %v457 = vld [vmem:[%s445 + $0x2c] sm:$0xf]
    %v458 = vld [vmem:[%s445 + $0x30] sm:$0xf]
    %v459 = vld [vmem:[%s445 + $0x34] sm:$0xf]
    %v460 = vld [vmem:[%s445 + $0x38] sm:$0xf]
    %v461 = vld [vmem:[%s445 + $0x3c] sm:$0xf]
    %s462 = scalar_lea.vmem %s3, 2
    %v463 = vld [vmem:[%s462] sm:$0x1]
    %v465 = vlaneseq
    %v466 = vshrl.u32 %v465, 7
    %v467 = vsub.s32 0, %v466
    %v468 = vrot.slane %v463, %v467
    %v486 = vunpack.c.l.b16 %v446
    %v487 = vunpack.c.l.b16 %v447
    %v488 = vunpack.c.l.b16 %v448
    %v489 = vunpack.c.l.b16 %v449
    %v490 = vunpack.c.l.b16 %v450
    %v491 = vunpack.c.l.b16 %v451
    %v492 = vunpack.c.l.b16 %v452
    %v493 = vunpack.c.l.b16 %v453
    %v494 = vunpack.c.l.b16 %v454
    %v495 = vunpack.c.l.b16 %v455
    %v496 = vunpack.c.l.b16 %v456
    %v497 = vunpack.c.l.b16 %v457
    %v498 = vunpack.c.l.b16 %v458
    %v499 = vunpack.c.l.b16 %v459
    %v500 = vunpack.c.l.b16 %v460
    %v501 = vunpack.c.l.b16 %v461
    %v502 = vpack.c.b16 %v487, %v486
    %v503 = vpack.c.b16 %v489, %v488
    %v504 = vpack.c.b16 %v491, %v490
    %v505 = vpack.c.b16 %v493, %v492
    %v506 = vpack.c.b16 %v495, %v494
    %v507 = vpack.c.b16 %v497, %v496
    %v508 = vpack.c.b16 %v499, %v498
    %v509 = vpack.c.b16 %v501, %v500
    %518 = vmatprep.subr.bf16.mxu0 0
    %519 = vmatpush1.bf16.msra.mxu0 %v502
    %520 = vmatprep.subr.bf16.mxu0 0
    %521 = vmatpush1.bf16.msra.mxu0 %v503
    %522 = vmatprep.subr.bf16.mxu0 0
    %523 = vmatpush1.bf16.msra.mxu0 %v504
    %524 = vmatprep.subr.bf16.mxu0 0
    %525 = vmatpush1.bf16.msra.mxu0 %v505
    %526 = vmatprep.subr.bf16.mxu0 0
    %527 = vmatpush1.bf16.msra.mxu0 %v506
    %528 = vmatprep.subr.bf16.mxu0 0
    %529 = vmatpush1.bf16.msra.mxu0 %v507
    %530 = vmatprep.subr.bf16.mxu0 0
    %531 = vmatpush1.bf16.msra.mxu0 %v508
    %532 = vmatprep.subr.bf16.mxu0 0
    %533 = vmatpush1.bf16.msra.mxu0 %v509
    %534 = vmatprep.subr.bf16.mxu0 0
    %535 = vmatpush1.bf16.msra.mxu0 0
    %536 = vmatprep.subr.bf16.mxu0 0
    %537 = vmatpush1.bf16.msra.mxu0 0
    %538 = vmatprep.subr.bf16.mxu0 0
    %539 = vmatpush1.bf16.msra.mxu0 0
    %540 = vmatprep.subr.bf16.mxu0 0
    %541 = vmatpush1.bf16.msra.mxu0 0
    %542 = vmatprep.subr.bf16.mxu0 0
    %543 = vmatpush1.bf16.msra.mxu0 0
    %544 = vmatprep.subr.bf16.mxu0 0
    %545 = vmatpush1.bf16.msra.mxu0 0
    %546 = vmatprep.subr.bf16.mxu0 0
    %547 = vmatpush1.bf16.msra.mxu0 0
    %548 = vmatprep.subr.bf16.mxu0 0
    %549 = vmatpush1.bf16.msra.mxu0 0
    %550 = vmatprep.mubr.bf16.mxu0 0
    %551 = vmatmul.mubr.bf16.gmra.mrb[0].mxu0 %v444
    %v552 = vpop.f32.mrb[0].mxu0
    %v553 = vadd.f32 %v468, %v552
    %v554 = vpop.f32.mrb[0].mxu0
    %v555 = vpop.f32.mrb[0].mxu0
    %v556 = vadd.f32 %v468, %v555
    %v557 = vpop.f32.mrb[0].mxu0
    %558 = vdwg.mxu0
    %vm559 = vcmp.gt.f32.partialorder %v553, 0.0
    %vm560 = vcmp.gt.f32.partialorder %v556, 0.0
    %v561 = vmul.f32 %v553, 0.01
    %v562 = vmul.f32 %v556, 0.01
    %v563 = vsel %vm559, %v553, %v561
    %v564 = vsel %vm560, %v556, %v562
    %565 = vst [vmem:[#allocation8] sm:$0xff] %v563
    %566 = vst [vmem:[#allocation8 + $0x8] sm:$0xff] %v564
    // Predicated region
    $region30: #{gcn3_forward.1} parent=1 // pred_check
      _
    $region31: #{gcn3_forward.1} parent=1 // pred_check_branch
      %568 = sbr.rel (0) target = $region33
    $region32: #{gcn3_forward.1} parent=1 // pred_region
      %s570 = ssub.s32 256, 256
      %571 = vsyncadd [#allocation4], %s570
      %s572 = sshll.u32 [#allocation8], 4
      %s573 = int_to_ptr.vmem [resolvable:$true] %s572
      %578 = dma.vmem_to_hbm [thread:$0]  %s573, 256, %s4, [#allocation4], 128, 128, 8
    $region33: #{gcn3_forward.1} parent=1 // pred_fallthru
      _
    // Predicated region
    $region34: #{gcn3_forward.1} parent=1 // pred_check
      _
    $region35: #{gcn3_forward.1} parent=1 // pred_check_branch
      %580 = sbr.rel (0) target = $region37
    $region36: #{gcn3_forward.1} parent=1 // pred_region
      %581 = dma.done [#allocation4], 256
    $region37: #{gcn3_forward.1} parent=1 // pred_fallthru
      _
    %582 = vsyncpa [#allocation3], 1
    %583 = vsyncpa [#allocation6], 1
    %584 = vsyncpa [#allocation4], 1

</llo_original>
